<compile_context>
chip_gen: v5e
topology: v5e:2x2
jax: 0.10.0
libtpu: 0.0.40
codegen_flags: <defaults>
</compile_context>

<pallas_src>
import jax
import jax.numpy as jnp
from jax.experimental import pallas as pl
from jax.experimental.pallas import tpu as pltpu


def unit_processor_kernel(feat_ref, mask_ref, w1_ref, b1_ref, w2_ref, b2_ref, out_ref):
    # feat_ref: (TILE_G, U_pad, 3)   mask_ref: (TILE_G, U_pad, 1)
    # w1: (3, 64)  b1: (1, 64)  w2: (64, 128)  b2: (1, 128)
    # out_ref: (TILE_G, 128)
    tg, up, _ = feat_ref.shape
    feat = feat_ref[...]                                # (TG, UP, 3)
    w1 = w1_ref[...]                                    # (3, 64)

    # fc1: contraction depth K=3 would waste the MXU -> 3 VPU broadcast FMAs.
    h = (feat[:, :, 0:1] * w1[0:1, :]
         + feat[:, :, 1:2] * w1[1:2, :]
         + feat[:, :, 2:3] * w1[2:3, :]
         + b1_ref[...])                                 # (TG, UP, 64)
    h = jnp.maximum(h, 0.0)                             # relu(fc1)

    # fc2: single MXU matmul with large M = TG*UP, K=64, N=128.
    h2 = jnp.dot(h.reshape(tg * up, 64), w2_ref[...],
                 preferred_element_type=jnp.float32)    # (TG*UP, 128)
    h2 = jnp.maximum(h2 + b2_ref[...], 0.0)             # relu(fc2)

    h2 = h2.reshape(tg, up, 128) * mask_ref[...]        # mask broadcast (TG, UP, 1)
    out_ref[...] = jnp.max(h2, axis=1)                  # max over units -> (TG, 128)


def unit_processor(positions, energy, mask, params, *, tile_g_max=256):
    """Pallas equivalent of UnitProcessor.forward."""
    w1, b1, w2, b2 = params                  # weights stored as (in, out); torch does x @ W.T
    B, T, U, _ = positions.shape
    G = B * T

    # Sublane-aligned unit axis and group tiling.
    U_pad = ((U + 7) // 8) * 8
    g_round = ((G + 7) // 8) * 8
    tile_g = min(tile_g_max, g_round)        # keeps fp32 intermediates ~3 MiB at tile_g=256
    G_pad = pl.cdiv(G, tile_g) * tile_g

    # Glue (concat / reshape / zero-pad) stays in plain JAX; hot path in the kernel.
    feats = jnp.concatenate([positions, energy[..., None]], axis=-1)     # (B, T, U, 3)
    feats = feats.reshape(G, U, 3).astype(jnp.float32)
    mask_g = mask.reshape(G, U, 1).astype(jnp.float32)
    feats = jnp.pad(feats, ((0, G_pad - G), (0, U_pad - U), (0, 0)))
    mask_g = jnp.pad(mask_g, ((0, G_pad - G), (0, U_pad - U), (0, 0)))

    b1_2d = b1.reshape(1, 64).astype(jnp.float32)
    b2_2d = b2.reshape(1, 128).astype(jnp.float32)

    out = pl.pallas_call(
        unit_processor_kernel,
        out_shape=jax.ShapeDtypeStruct((G_pad, 128), jnp.float32),
        grid_spec=pltpu.PrefetchScalarGridSpec(
            num_scalar_prefetch=0,
            grid=(G_pad // tile_g,),
            in_specs=[
                pl.BlockSpec((tile_g, U_pad, 3), lambda g: (g, 0, 0)),   # features tile
                pl.BlockSpec((tile_g, U_pad, 1), lambda g: (g, 0, 0)),   # mask tile
                pl.BlockSpec((3, 64), lambda g: (0, 0)),                 # w1 (resident)
                pl.BlockSpec((1, 64), lambda g: (0, 0)),                 # b1
                pl.BlockSpec((64, 128), lambda g: (0, 0)),               # w2 (resident)
                pl.BlockSpec((1, 128), lambda g: (0, 0)),                # b2
            ],
            out_specs=pl.BlockSpec((tile_g, 128), lambda g: (g, 0)),     # lane/sublane-dense
        ),
        compiler_params=pltpu.CompilerParams(
            dimension_semantics=("parallel",)),   # shards across 2 TCs on v7x; neutral on v5e/v6e
    )(feats, mask_g, w1.astype(jnp.float32), b1_2d, w2.astype(jnp.float32), b2_2d)

    return out[:G].reshape(B, T, 128)


def reference(positions, energy, mask, params):
    """Pure-JAX reference matching the PyTorch forward exactly."""
    w1, b1, w2, b2 = params
    feats = jnp.concatenate([positions, energy[..., None]], axis=-1)
    x = jax.nn.relu(feats @ w1 + b1)
    x = jax.nn.relu(x @ w2 + b2)
    x = x * mask[..., None]
    return jnp.max(x, axis=2)


if __name__ == "__main__":
    key = jax.random.PRNGKey(0)
    kp, ke, km, k1, k2, k3, k4 = jax.random.split(key, 7)

    B, T, U = 2, 2, 10  # batch, teams, max_units=10 (module default)
    positions = jax.random.uniform(kp, (B, T, U, 2), jnp.float32, 0.0, 24.0)
    energy = jax.random.uniform(ke, (B, T, U), jnp.float32, 0.0, 100.0)
    mask = (jax.random.uniform(km, (B, T, U)) > 0.3).astype(jnp.float32)

    # Deterministic synthetic parameter init (PyTorch-Linear-like uniform bounds).
    lim1 = 1.0 / jnp.sqrt(3.0)
    lim2 = 1.0 / jnp.sqrt(64.0)
    w1 = jax.random.uniform(k1, (3, 64), jnp.float32, -lim1, lim1)
    b1 = jax.random.uniform(k2, (64,), jnp.float32, -lim1, lim1)
    w2 = jax.random.uniform(k3, (64, 128), jnp.float32, -lim2, lim2)
    b2 = jax.random.uniform(k4, (128,), jnp.float32, -lim2, lim2)
    params = (w1, b1, w2, b2)

    out = unit_processor(positions, energy, mask, params)
    out = jax.block_until_ready(out)

    ref = reference(positions, energy, mask, params)
    assert out.shape == (B, T, 128), out.shape
    assert jnp.allclose(out, ref, atol=1e-4, rtol=1e-4), "mismatch vs reference"
    print("KERNEL_OK")
</pallas_src>

<mosaic_0001>
module attributes {stable_mosaic.version = 11 : i64} {
  func.func @unit_processor_kernel(%arg0: i32, %arg1: memref<8x16x3xf32, #tpu.memory_space<vmem>>, %arg2: memref<8x16x1xf32, #tpu.memory_space<vmem>>, %arg3: memref<3x64xf32, #tpu.memory_space<vmem>>, %arg4: memref<1x64xf32, #tpu.memory_space<vmem>>, %arg5: memref<64x128xf32, #tpu.memory_space<vmem>>, %arg6: memref<1x128xf32, #tpu.memory_space<vmem>>, %arg7: memref<8x128xf32, #tpu.memory_space<vmem>>) attributes {dimension_semantics = [#tpu.dimension_semantics<parallel>], iteration_bounds = array<i64: 1>, scalar_prefetch = 0 : i64, scratch_operands = 0 : i64, tpu.core_type = #tpu.core_type<tc>, window_params = [{transform_indices = @transform_0, window_bounds = array<i64: 8, 16, 3>}, {transform_indices = @transform_1, window_bounds = array<i64: 8, 16, 1>}, {pipeline_mode = #tpu.pipeline_mode<synchronous>, transform_indices = @transform_2, window_bounds = array<i64: 3, 64>}, {pipeline_mode = #tpu.pipeline_mode<synchronous>, transform_indices = @transform_3, window_bounds = array<i64: 1, 64>}, {pipeline_mode = #tpu.pipeline_mode<synchronous>, transform_indices = @transform_4, window_bounds = array<i64: 64, 128>}, {pipeline_mode = #tpu.pipeline_mode<synchronous>, transform_indices = @transform_5, window_bounds = array<i64: 1, 128>}, {transform_indices = @transform_6, window_bounds = array<i64: 8, 128>}]} {
    %c0 = arith.constant 0 : index
    %c0_0 = arith.constant 0 : index
    %c0_1 = arith.constant 0 : index
    %0 = vector.load %arg1[%c0, %c0_0, %c0_1] : memref<8x16x3xf32, #tpu.memory_space<vmem>>, vector<8x16x3xf32>
    %c0_2 = arith.constant 0 : index
    %c0_3 = arith.constant 0 : index
    %1 = vector.load %arg3[%c0_2, %c0_3] : memref<3x64xf32, #tpu.memory_space<vmem>>, vector<3x64xf32>
    %2 = vector.extract_strided_slice %0 {offsets = [0, 0, 0], sizes = [8, 16, 1], strides = [1, 1, 1]} : vector<8x16x3xf32> to vector<8x16x1xf32>
    %3 = vector.extract_strided_slice %1 {offsets = [0, 0], sizes = [1, 64], strides = [1, 1]} : vector<3x64xf32> to vector<1x64xf32>
    %4 = vector.shape_cast %3 : vector<1x64xf32> to vector<1x1x64xf32>
    %5 = vector.broadcast %2 : vector<8x16x1xf32> to vector<8x16x64xf32>
    %6 = vector.broadcast %4 : vector<1x1x64xf32> to vector<8x16x64xf32>
    %7 = arith.mulf %5, %6 : vector<8x16x64xf32>
    %8 = vector.extract_strided_slice %0 {offsets = [0, 0, 1], sizes = [8, 16, 1], strides = [1, 1, 1]} : vector<8x16x3xf32> to vector<8x16x1xf32>
    %9 = vector.extract_strided_slice %1 {offsets = [1, 0], sizes = [1, 64], strides = [1, 1]} : vector<3x64xf32> to vector<1x64xf32>
    %10 = vector.shape_cast %9 : vector<1x64xf32> to vector<1x1x64xf32>
    %11 = vector.broadcast %8 : vector<8x16x1xf32> to vector<8x16x64xf32>
    %12 = vector.broadcast %10 : vector<1x1x64xf32> to vector<8x16x64xf32>
    %13 = arith.mulf %11, %12 : vector<8x16x64xf32>
    %14 = arith.addf %7, %13 : vector<8x16x64xf32>
    %15 = vector.extract_strided_slice %0 {offsets = [0, 0, 2], sizes = [8, 16, 1], strides = [1, 1, 1]} : vector<8x16x3xf32> to vector<8x16x1xf32>
    %16 = vector.extract_strided_slice %1 {offsets = [2, 0], sizes = [1, 64], strides = [1, 1]} : vector<3x64xf32> to vector<1x64xf32>
    %17 = vector.shape_cast %16 : vector<1x64xf32> to vector<1x1x64xf32>
    %18 = vector.broadcast %15 : vector<8x16x1xf32> to vector<8x16x64xf32>
    %19 = vector.broadcast %17 : vector<1x1x64xf32> to vector<8x16x64xf32>
    %20 = arith.mulf %18, %19 : vector<8x16x64xf32>
    %21 = arith.addf %14, %20 : vector<8x16x64xf32>
    %c0_4 = arith.constant 0 : index
    %c0_5 = arith.constant 0 : index
    %22 = vector.load %arg4[%c0_4, %c0_5] : memref<1x64xf32, #tpu.memory_space<vmem>>, vector<1x64xf32>
    %23 = vector.shape_cast %22 : vector<1x64xf32> to vector<1x1x64xf32>
    %24 = vector.broadcast %23 : vector<1x1x64xf32> to vector<8x16x64xf32>
    %25 = arith.addf %21, %24 : vector<8x16x64xf32>
    %cst = arith.constant 0.000000e+00 : f32
    %26 = vector.broadcast %cst : f32 to vector<8x16x64xf32>
    %27 = arith.maximumf %25, %26 : vector<8x16x64xf32>
    %28 = vector.shape_cast %27 : vector<8x16x64xf32> to vector<128x64xf32>
    %c0_6 = arith.constant 0 : index
    %c0_7 = arith.constant 0 : index
    %29 = vector.load %arg5[%c0_6, %c0_7] : memref<64x128xf32, #tpu.memory_space<vmem>>, vector<64x128xf32>
    %cst_8 = arith.constant dense<0.000000e+00> : vector<128x128xf32>
    %30 = tpu.matmul %28, %29, %cst_8 {dimension_numbers = #tpu.dot_dimension_numbers<[1], [0], [0], [1], [0, 0, 1, 1], [], []>} : vector<128x64xf32>, vector<64x128xf32>, vector<128x128xf32> -> vector<128x128xf32>
    %c0_9 = arith.constant 0 : index
    %c0_10 = arith.constant 0 : index
    %31 = vector.load %arg6[%c0_9, %c0_10] : memref<1x128xf32, #tpu.memory_space<vmem>>, vector<1x128xf32>
    %32 = vector.broadcast %31 : vector<1x128xf32> to vector<128x128xf32>
    %33 = arith.addf %30, %32 : vector<128x128xf32>
    %cst_11 = arith.constant 0.000000e+00 : f32
    %34 = vector.broadcast %cst_11 : f32 to vector<128x128xf32>
    %35 = arith.maximumf %33, %34 : vector<128x128xf32>
    %36 = vector.shape_cast %35 : vector<128x128xf32> to vector<8x16x128xf32>
    %c0_12 = arith.constant 0 : index
    %c0_13 = arith.constant 0 : index
    %c0_14 = arith.constant 0 : index
    %37 = vector.load %arg2[%c0_12, %c0_13, %c0_14] : memref<8x16x1xf32, #tpu.memory_space<vmem>>, vector<8x16x1xf32>
    %38 = vector.broadcast %37 : vector<8x16x1xf32> to vector<8x16x128xf32>
    %39 = arith.mulf %36, %38 : vector<8x16x128xf32>
    %cst_15 = arith.constant dense<0xFF800000> : vector<8x128xf32>
    %40 = vector.multi_reduction <maximumf>, %39, %cst_15 [1] : vector<8x16x128xf32> to vector<8x128xf32>
    %c0_16 = arith.constant 0 : index
    %c0_17 = arith.constant 0 : index
    %41 = vector.load %arg7[%c0_16, %c0_17] : memref<8x128xf32, #tpu.memory_space<vmem>>, vector<8x128xf32>
    tpu.vector_store %arg7[%c0_16, %c0_17], %40 {strides = array<i32>} : memref<8x128xf32, #tpu.memory_space<vmem>>, vector<8x128xf32>,
    return
  }
  func.func @transform_0(%arg0: i32) -> (i32, i32, i32) {
    %c0_i32 = arith.constant 0 : i32
    %c0_i32_0 = arith.constant 0 : i32
    %c0_i32_1 = arith.constant 0 : i32
    return %arg0, %c0_i32, %c0_i32_0 : i32, i32, i32
  }
  func.func @transform_1(%arg0: i32) -> (i32, i32, i32) {
    %c0_i32 = arith.constant 0 : i32
    %c0_i32_0 = arith.constant 0 : i32
    %c0_i32_1 = arith.constant 0 : i32
    return %arg0, %c0_i32, %c0_i32_0 : i32, i32, i32
  }
  func.func @transform_2(%arg0: i32) -> (i32, i32) {
    %c0_i32 = arith.constant 0 : i32
    %c0_i32_0 = arith.constant 0 : i32
    %c0_i32_1 = arith.constant 0 : i32
    return %c0_i32, %c0_i32_0 : i32, i32
  }
  func.func @transform_3(%arg0: i32) -> (i32, i32) {
    %c0_i32 = arith.constant 0 : i32
    %c0_i32_0 = arith.constant 0 : i32
    %c0_i32_1 = arith.constant 0 : i32
    return %c0_i32, %c0_i32_0 : i32, i32
  }
  func.func @transform_4(%arg0: i32) -> (i32, i32) {
    %c0_i32 = arith.constant 0 : i32
    %c0_i32_0 = arith.constant 0 : i32
    %c0_i32_1 = arith.constant 0 : i32
    return %c0_i32, %c0_i32_0 : i32, i32
  }
  func.func @transform_5(%arg0: i32) -> (i32, i32) {
    %c0_i32 = arith.constant 0 : i32
    %c0_i32_0 = arith.constant 0 : i32
    %c0_i32_1 = arith.constant 0 : i32
    return %c0_i32, %c0_i32_0 : i32, i32
  }
  func.func @transform_6(%arg0: i32) -> (i32, i32) {
    %c0_i32 = arith.constant 0 : i32
    %c0_i32_0 = arith.constant 0 : i32
    return %arg0, %c0_i32 : i32, i32
  }
}

</mosaic_0001>

<llo_original>
// kernel: tpu_custom_call.1
$region0: #{tpu_custom_call.1}
  #allocation0 [shape = 'u32[]', space=smem, size = 0x4, offset = 0x4, fixed_abs, tag = 'smem constant byte address 0x4 - core index']
  #allocation1 [shape = 'u32[72,128]{1,0:T(1,128)}', space=vmem, size = 0x9000, scoped, tag = 'internal scratch']
  %s0 = inlined_call_operand.vmem [shape: f32[8,16,3], index: 0, kind: input, shape index: {}]
  %s1 = inlined_call_operand.vmem [shape: f32[8,16,1], index: 1, kind: input, shape index: {}]
  %s2 = inlined_call_operand.vmem [shape: f32[3,64], index: 2, kind: input, shape index: {}]
  %s3 = inlined_call_operand.vmem [shape: f32[1,64], index: 3, kind: input, shape index: {}]
  %s4 = inlined_call_operand.vmem [shape: f32[64,128], index: 4, kind: input, shape index: {}]
  %s5 = inlined_call_operand.vmem [shape: f32[1,128], index: 5, kind: input, shape index: {}]
  %s6 = inlined_call_operand.hbm [shape: f32[8,128], index: 6, kind: output, shape index: {}]
  %s7 = sld [smem:[#allocation0]]
  $region34: #{tpu_custom_call.1} parent=0
    _
  %s9 = ssub.s32 1, %s7
  %s10 = scalar_select 0, %s9, %s7
  $region1: #{tpu_custom_call.1} parent=0
    #allocation2 [shape = 'u8[4096]{0}', space=vmem, size = 0x1000, scoped, tag = 'output window, operand 0, single buffered']
    #allocation3 [shape = 's32[1]{0}', space=sflag, size = 0x4, scoped, tag = 'scoped memory for tpu_custom_call.1']
    %11 = vsyncpa [#allocation3], 0
    // Predicated region
    $region2: #{tpu_custom_call.1} parent=1 // pred_check
      _
    $region3: #{tpu_custom_call.1} parent=1 // pred_check_branch
      %13 = sbr.rel (0) target = $region5
    $region4: #{tpu_custom_call.1} parent=1 // pred_region
      _
    $region5: #{tpu_custom_call.1} parent=1 // pred_fallthru
      _
    // Predicated region
    $region6: #{tpu_custom_call.1} parent=1 // pred_check
      _
    $region7: #{tpu_custom_call.1} parent=1 // pred_check_branch
      %15 = sbr.rel (0) target = $region9
    $region8: #{tpu_custom_call.1} parent=1 // pred_region
      _
    $region9: #{tpu_custom_call.1} parent=1 // pred_fallthru
      _
    // Predicated region
    $region10: #{tpu_custom_call.1} parent=1 // pred_check
      _
    $region11: #{tpu_custom_call.1} parent=1 // pred_check_branch
      %17 = sbr.rel (0) target = $region13
    $region12: #{tpu_custom_call.1} parent=1 // pred_region
      _
    $region13: #{tpu_custom_call.1} parent=1 // pred_fallthru
      _
    // Predicated region
    $region14: #{tpu_custom_call.1} parent=1 // pred_check
      _
    $region15: #{tpu_custom_call.1} parent=1 // pred_check_branch
      %19 = sbr.rel (0) target = $region17
    $region16: #{tpu_custom_call.1} parent=1 // pred_region
      _
    $region17: #{tpu_custom_call.1} parent=1 // pred_fallthru
      _
    // Predicated region
    $region18: #{tpu_custom_call.1} parent=1 // pred_check
      _
    $region19: #{tpu_custom_call.1} parent=1 // pred_check_branch
      %21 = sbr.rel (0) target = $region21
    $region20: #{tpu_custom_call.1} parent=1 // pred_region
      _
    $region21: #{tpu_custom_call.1} parent=1 // pred_fallthru
      _
    // Predicated region
    $region22: #{tpu_custom_call.1} parent=1 // pred_check
      _
    $region23: #{tpu_custom_call.1} parent=1 // pred_check_branch
      %23 = sbr.rel (0) target = $region25
    $region24: #{tpu_custom_call.1} parent=1 // pred_region
      _
    $region25: #{tpu_custom_call.1} parent=1 // pred_fallthru
      _
    %v24 = vld [vmem:[%s0] sm:$0xff]
    %v25 = vld [vmem:[%s0 + $0x8] sm:$0xff]
    %v26 = vld [vmem:[%s0 + $0x10] sm:$0xff]
    %v27 = vld [vmem:[%s0 + $0x18] sm:$0xff]
    %v28 = vld [vmem:[%s0 + $0x20] sm:$0xff]
    %v29 = vld [vmem:[%s0 + $0x28] sm:$0xff]
    %v30 = vld [vmem:[%s0 + $0x30] sm:$0xff]
    %v31 = vld [vmem:[%s0 + $0x38] sm:$0xff]
    %v32 = vld [vmem:[%s0 + $0x40] sm:$0xff]
    %v33 = vld [vmem:[%s0 + $0x48] sm:$0xff]
    %v34 = vld [vmem:[%s0 + $0x50] sm:$0xff]
    %v35 = vld [vmem:[%s0 + $0x58] sm:$0xff]
    %v36 = vld [vmem:[%s0 + $0x60] sm:$0xff]
    %v37 = vld [vmem:[%s0 + $0x68] sm:$0xff]
    %v38 = vld [vmem:[%s0 + $0x70] sm:$0xff]
    %v39 = vld [vmem:[%s0 + $0x78] sm:$0xff]
    %v40 = vld [vmem:[%s2] sm:$0x7]
    %42 = vset.pattern.permute.xlu0 0
    %43 = vperm.xlu0 %42, %v24
    %v44 = vpop.permute.xlu0 %43
    %47 = vset.pattern.permute.xlu0 0
    %48 = vperm.xlu0 %47, %v25
    %v49 = vpop.permute.xlu0 %48
    %52 = vset.pattern.permute.xlu0 0
    %53 = vperm.xlu0 %52, %v26
    %v54 = vpop.permute.xlu0 %53
    %57 = vset.pattern.permute.xlu0 0
    %58 = vperm.xlu0 %57, %v27
    %v59 = vpop.permute.xlu0 %58
    %62 = vset.pattern.permute.xlu0 0
    %63 = vperm.xlu0 %62, %v28
    %v64 = vpop.permute.xlu0 %63
    %67 = vset.pattern.permute.xlu0 0
    %68 = vperm.xlu0 %67, %v29
    %v69 = vpop.permute.xlu0 %68
    %72 = vset.pattern.permute.xlu0 0
    %73 = vperm.xlu0 %72, %v30
    %v74 = vpop.permute.xlu0 %73
    %77 = vset.pattern.permute.xlu0 0
    %78 = vperm.xlu0 %77, %v31
    %v79 = vpop.permute.xlu0 %78
    %82 = vset.pattern.permute.xlu0 0
    %83 = vperm.xlu0 %82, %v32
    %v84 = vpop.permute.xlu0 %83
    %87 = vset.pattern.permute.xlu0 0
    %88 = vperm.xlu0 %87, %v33
    %v89 = vpop.permute.xlu0 %88
    %92 = vset.pattern.permute.xlu0 0
    %93 = vperm.xlu0 %92, %v34
    %v94 = vpop.permute.xlu0 %93
    %97 = vset.pattern.permute.xlu0 0
    %98 = vperm.xlu0 %97, %v35
    %v99 = vpop.permute.xlu0 %98
    %102 = vset.pattern.permute.xlu0 0
    %103 = vperm.xlu0 %102, %v36
    %v104 = vpop.permute.xlu0 %103
    %107 = vset.pattern.permute.xlu0 0
    %108 = vperm.xlu0 %107, %v37
    %v109 = vpop.permute.xlu0 %108
    %112 = vset.pattern.permute.xlu0 0
    %113 = vperm.xlu0 %112, %v38
    %v114 = vpop.permute.xlu0 %113
    %117 = vset.pattern.permute.xlu0 0
    %118 = vperm.xlu0 %117, %v39
    %v119 = vpop.permute.xlu0 %118
    %v121 = vperm.slane %v40, 0
    %v122 = vmul.f32 %v44, %v121
    %v123 = vmul.f32 %v49, %v121
    %v124 = vmul.f32 %v54, %v121
    %v125 = vmul.f32 %v59, %v121
    %v126 = vmul.f32 %v64, %v121
    %v127 = vmul.f32 %v69, %v121
    %v128 = vmul.f32 %v74, %v121
    %v129 = vmul.f32 %v79, %v121
    %v130 = vmul.f32 %v84, %v121
    %v131 = vmul.f32 %v89, %v121
    %v132 = vmul.f32 %v94, %v121
    %v133 = vmul.f32 %v99, %v121
    %v134 = vmul.f32 %v104, %v121
    %v135 = vmul.f32 %v109, %v121
    %v136 = vmul.f32 %v114, %v121
    %v137 = vmul.f32 %v119, %v121
    %138 = vset.pattern.permute.xlu0 1
    %139 = vperm.xlu0 %138, %v24
    %v140 = vpop.permute.xlu0 %139
    %142 = vset.pattern.permute.xlu0 1
    %143 = vperm.xlu0 %142, %v25
    %v144 = vpop.permute.xlu0 %143
    %146 = vset.pattern.permute.xlu0 1
    %147 = vperm.xlu0 %146, %v26
    %v148 = vpop.permute.xlu0 %147
    %150 = vset.pattern.permute.xlu0 1
    %151 = vperm.xlu0 %150, %v27
    %v152 = vpop.permute.xlu0 %151
    %154 = vset.pattern.permute.xlu0 1
    %155 = vperm.xlu0 %154, %v28
    %v156 = vpop.permute.xlu0 %155
    %158 = vset.pattern.permute.xlu0 1
    %159 = vperm.xlu0 %158, %v29
    %v160 = vpop.permute.xlu0 %159
    %162 = vset.pattern.permute.xlu0 1
    %163 = vperm.xlu0 %162, %v30
    %v164 = vpop.permute.xlu0 %163
    %166 = vset.pattern.permute.xlu0 1
    %167 = vperm.xlu0 %166, %v31
    %v168 = vpop.permute.xlu0 %167
    %170 = vset.pattern.permute.xlu0 1
    %171 = vperm.xlu0 %170, %v32
    %v172 = vpop.permute.xlu0 %171
    %174 = vset.pattern.permute.xlu0 1
    %175 = vperm.xlu0 %174, %v33
    %v176 = vpop.permute.xlu0 %175
    %178 = vset.pattern.permute.xlu0 1
    %179 = vperm.xlu0 %178, %v34
    %v180 = vpop.permute.xlu0 %179
    %182 = vset.pattern.permute.xlu0 1
    %183 = vperm.xlu0 %182, %v35
    %v184 = vpop.permute.xlu0 %183
    %186 = vset.pattern.permute.xlu0 1
    %187 = vperm.xlu0 %186, %v36
    %v188 = vpop.permute.xlu0 %187
    %190 = vset.pattern.permute.xlu0 1
    %191 = vperm.xlu0 %190, %v37
    %v192 = vpop.permute.xlu0 %191
    %194 = vset.pattern.permute.xlu0 1
    %195 = vperm.xlu0 %194, %v38
    %v196 = vpop.permute.xlu0 %195
    %198 = vset.pattern.permute.xlu0 1
    %199 = vperm.xlu0 %198, %v39
    %v200 = vpop.permute.xlu0 %199
    %v202 = vperm.slane %v40, 1
    %v203 = vmul.f32 %v140, %v202
    %v204 = vmul.f32 %v144, %v202
    %v205 = vmul.f32 %v148, %v202
    %v206 = vmul.f32 %v152, %v202
    %v207 = vmul.f32 %v156, %v202
    %v208 = vmul.f32 %v160, %v202
    %v209 = vmul.f32 %v164, %v202
    %v210 = vmul.f32 %v168, %v202
    %v211 = vmul.f32 %v172, %v202
    %v212 = vmul.f32 %v176, %v202
    %v213 = vmul.f32 %v180, %v202
    %v214 = vmul.f32 %v184, %v202
    %v215 = vmul.f32 %v188, %v202
    %v216 = vmul.f32 %v192, %v202
    %v217 = vmul.f32 %v196, %v202
    %v218 = vmul.f32 %v200, %v202
    %v219 = vadd.f32 %v122, %v203
    %v220 = vadd.f32 %v123, %v204
    %v221 = vadd.f32 %v124, %v205
    %v222 = vadd.f32 %v125, %v206
    %v223 = vadd.f32 %v126, %v207
    %v224 = vadd.f32 %v127, %v208
    %v225 = vadd.f32 %v128, %v209
    %v226 = vadd.f32 %v129, %v210
    %v227 = vadd.f32 %v130, %v211
    %v228 = vadd.f32 %v131, %v212
    %v229 = vadd.f32 %v132, %v213
    %v230 = vadd.f32 %v133, %v214
    %v231 = vadd.f32 %v134, %v215
    %v232 = vadd.f32 %v135, %v216
    %v233 = vadd.f32 %v136, %v217
    %v234 = vadd.f32 %v137, %v218
    %235 = vset.pattern.permute.xlu0 2
    %236 = vperm.xlu0 %235, %v24
    %v237 = vpop.permute.xlu0 %236
    %239 = vset.pattern.permute.xlu0 2
    %240 = vperm.xlu0 %239, %v25
    %v241 = vpop.permute.xlu0 %240
    %243 = vset.pattern.permute.xlu0 2
    %244 = vperm.xlu0 %243, %v26
    %v245 = vpop.permute.xlu0 %244
    %247 = vset.pattern.permute.xlu0 2
    %248 = vperm.xlu0 %247, %v27
    %v249 = vpop.permute.xlu0 %248
    %251 = vset.pattern.permute.xlu0 2
    %252 = vperm.xlu0 %251, %v28
    %v253 = vpop.permute.xlu0 %252
    %255 = vset.pattern.permute.xlu0 2
    %256 = vperm.xlu0 %255, %v29
    %v257 = vpop.permute.xlu0 %256
    %259 = vset.pattern.permute.xlu0 2
    %260 = vperm.xlu0 %259, %v30
    %v261 = vpop.permute.xlu0 %260
    %263 = vset.pattern.permute.xlu0 2
    %264 = vperm.xlu0 %263, %v31
    %v265 = vpop.permute.xlu0 %264
    %267 = vset.pattern.permute.xlu0 2
    %268 = vperm.xlu0 %267, %v32
    %v269 = vpop.permute.xlu0 %268
    %271 = vset.pattern.permute.xlu0 2
    %272 = vperm.xlu0 %271, %v33
    %v273 = vpop.permute.xlu0 %272
    %275 = vset.pattern.permute.xlu0 2
    %276 = vperm.xlu0 %275, %v34
    %v277 = vpop.permute.xlu0 %276
    %279 = vset.pattern.permute.xlu0 2
    %280 = vperm.xlu0 %279, %v35
    %v281 = vpop.permute.xlu0 %280
    %283 = vset.pattern.permute.xlu0 2
    %284 = vperm.xlu0 %283, %v36
    %v285 = vpop.permute.xlu0 %284
    %287 = vset.pattern.permute.xlu0 2
    %288 = vperm.xlu0 %287, %v37
    %v289 = vpop.permute.xlu0 %288
    %291 = vset.pattern.permute.xlu0 2
    %292 = vperm.xlu0 %291, %v38
    %v293 = vpop.permute.xlu0 %292
    %295 = vset.pattern.permute.xlu0 2
    %296 = vperm.xlu0 %295, %v39
    %v297 = vpop.permute.xlu0 %296
    %v299 = vperm.slane %v40, 2
    %v300 = vmul.f32 %v237, %v299
    %v301 = vmul.f32 %v241, %v299
    %v302 = vmul.f32 %v245, %v299
    %v303 = vmul.f32 %v249, %v299
    %v304 = vmul.f32 %v253, %v299
    %v305 = vmul.f32 %v257, %v299
    %v306 = vmul.f32 %v261, %v299
    %v307 = vmul.f32 %v265, %v299
    %v308 = vmul.f32 %v269, %v299
    %v309 = vmul.f32 %v273, %v299
    %v310 = vmul.f32 %v277, %v299
    %v311 = vmul.f32 %v281, %v299
    %v312 = vmul.f32 %v285, %v299
    %v313 = vmul.f32 %v289, %v299
    %v314 = vmul.f32 %v293, %v299
    %v315 = vmul.f32 %v297, %v299
    %v316 = vadd.f32 %v219, %v300
    %v317 = vadd.f32 %v220, %v301
    %v318 = vadd.f32 %v221, %v302
    %v319 = vadd.f32 %v222, %v303
    %v320 = vadd.f32 %v223, %v304
    %v321 = vadd.f32 %v224, %v305
    %v322 = vadd.f32 %v225, %v306
    %v323 = vadd.f32 %v226, %v307
    %v324 = vadd.f32 %v227, %v308
    %v325 = vadd.f32 %v228, %v309
    %v326 = vadd.f32 %v229, %v310
    %v327 = vadd.f32 %v230, %v311
    %v328 = vadd.f32 %v231, %v312
    %v329 = vadd.f32 %v232, %v313
    %v330 = vadd.f32 %v233, %v314
    %v331 = vadd.f32 %v234, %v315
    %v332 = vld [vmem:[%s3] sm:$0x1]
    %v334 = vperm.slane %v332, 0
    %v336 = vadd.f32 %v316, %v334
    %v337 = vadd.f32 %v317, %v334
    %v338 = vadd.f32 %v318, %v334
    %v339 = vadd.f32 %v319, %v334
    %v340 = vadd.f32 %v320, %v334
    %v341 = vadd.f32 %v321, %v334
    %v342 = vadd.f32 %v322, %v334
    %v343 = vadd.f32 %v323, %v334
    %v344 = vadd.f32 %v324, %v334
    %v345 = vadd.f32 %v325, %v334
    %v346 = vadd.f32 %v326, %v334
    %v347 = vadd.f32 %v327, %v334
    %v348 = vadd.f32 %v328, %v334
    %v349 = vadd.f32 %v329, %v334
    %v350 = vadd.f32 %v330, %v334
    %v351 = vadd.f32 %v331, %v334
    %v352 = vmax.f32 %v336, 0.0
    %v353 = vmax.f32 %v337, 0.0
    %v354 = vmax.f32 %v338, 0.0
    %v355 = vmax.f32 %v339, 0.0
    %v356 = vmax.f32 %v340, 0.0
    %v357 = vmax.f32 %v341, 0.0
    %v358 = vmax.f32 %v342, 0.0
    %v359 = vmax.f32 %v343, 0.0
    %v360 = vmax.f32 %v344, 0.0
    %v361 = vmax.f32 %v345, 0.0
    %v362 = vmax.f32 %v346, 0.0
    %v363 = vmax.f32 %v347, 0.0
    %v364 = vmax.f32 %v348, 0.0
    %v365 = vmax.f32 %v349, 0.0
    %v366 = vmax.f32 %v350, 0.0
    %v367 = vmax.f32 %v351, 0.0
    %v368 = vld [vmem:[%s4] sm:$0xff]
    %v369 = vld [vmem:[%s4 + $0x8] sm:$0xff]
    %v370 = vld [vmem:[%s4 + $0x10] sm:$0xff]
    %v371 = vld [vmem:[%s4 + $0x18] sm:$0xff]
    %v372 = vld [vmem:[%s4 + $0x20] sm:$0xff]
    %v373 = vld [vmem:[%s4 + $0x28] sm:$0xff]
    %v374 = vld [vmem:[%s4 + $0x30] sm:$0xff]
    %v375 = vld [vmem:[%s4 + $0x38] sm:$0xff]
    %v376 = vld [vmem:[%s5] sm:$0x1]
    %v378 = vperm.slane %v376, 0
    %vm380 = vcmask 523264
    %v382 = vsel %vm380, %v352, 0
    %v385 = vsel %vm380, %v353, 0
    %v388 = vsel %vm380, %v354, 0
    %v391 = vsel %vm380, %v355, 0
    %v394 = vsel %vm380, %v356, 0
    %v397 = vsel %vm380, %v357, 0
    %v400 = vsel %vm380, %v358, 0
    %v403 = vsel %vm380, %v359, 0
    %v406 = vsel %vm380, %v360, 0
    %v409 = vsel %vm380, %v361, 0
    %v412 = vsel %vm380, %v362, 0
    %v415 = vsel %vm380, %v363, 0
    %v418 = vsel %vm380, %v364, 0
    %v421 = vsel %vm380, %v365, 0
    %v424 = vsel %vm380, %v366, 0
    %v427 = vsel %vm380, %v367, 0
    %429 = vmatpush.msra.mxu0 0.0
    %430 = vmatpush.msra.mxu0 0.0
    %431 = vmatpush.msra.mxu0 0.0
    %432 = vmatpush.msra.mxu0 0.0
    %433 = vmatpush.msra.mxu0 0.0
    %434 = vmatpush.msra.mxu0 0.0
    %435 = vmatpush.msra.mxu0 0.0
    %436 = vmatpush.msra.mxu0 0.0
    %437 = vmatpush.msra.mxu0 %v375
    %438 = vmatpush.msra.mxu0 %v374
    %439 = vmatpush.msra.mxu0 %v373
    %440 = vmatpush.msra.mxu0 %v372
    %441 = vmatpush.msra.mxu0 %v371
    %442 = vmatpush.msra.mxu0 %v370
    %443 = vmatpush.msra.mxu0 %v369
    %444 = vmatpush.msra.mxu0 %v368
    %445 = vmatmul.f32.gmra.mxu0 %v382
    %v446 = vpop.f32.mrf.mxu0
    %v447 = vadd.f32 %v378, %v446
    %448 = vmatmul.f32.gmra.mxu0 %v385
    %v449 = vpop.f32.mrf.mxu0
    %v450 = vadd.f32 %v378, %v449
    %451 = vmatmul.f32.gmra.mxu0 %v388
    %v452 = vpop.f32.mrf.mxu0
    %v453 = vadd.f32 %v378, %v452
    %454 = vmatmul.f32.gmra.mxu0 %v391
    %v455 = vpop.f32.mrf.mxu0
    %v456 = vadd.f32 %v378, %v455
    %457 = vmatmul.f32.gmra.mxu0 %v394
    %v458 = vpop.f32.mrf.mxu0
    %v459 = vadd.f32 %v378, %v458
    %460 = vmatmul.f32.gmra.mxu0 %v397
    %v461 = vpop.f32.mrf.mxu0
    %v462 = vadd.f32 %v378, %v461
    %463 = vmatmul.f32.gmra.mxu0 %v400
    %v464 = vpop.f32.mrf.mxu0
    %v465 = vadd.f32 %v378, %v464
    %466 = vmatmul.f32.gmra.mxu0 %v403
    %v467 = vpop.f32.mrf.mxu0
    %v468 = vadd.f32 %v378, %v467
    %469 = vmatmul.f32.gmra.mxu0 %v406
    %v470 = vpop.f32.mrf.mxu0
    %v471 = vadd.f32 %v378, %v470
    %472 = vmatmul.f32.gmra.mxu0 %v409
    %v473 = vpop.f32.mrf.mxu0
    %v474 = vadd.f32 %v378, %v473
    %475 = vmatmul.f32.gmra.mxu0 %v412
    %v476 = vpop.f32.mrf.mxu0
    %v477 = vadd.f32 %v378, %v476
    %478 = vmatmul.f32.gmra.mxu0 %v415
    %v479 = vpop.f32.mrf.mxu0
    %v480 = vadd.f32 %v378, %v479
    %481 = vmatmul.f32.gmra.mxu0 %v418
    %v482 = vpop.f32.mrf.mxu0
    %v483 = vadd.f32 %v378, %v482
    %484 = vmatmul.f32.gmra.mxu0 %v421
    %v485 = vpop.f32.mrf.mxu0
    %v486 = vadd.f32 %v378, %v485
    %487 = vmatmul.f32.gmra.mxu0 %v424
    %v488 = vpop.f32.mrf.mxu0
    %v489 = vadd.f32 %v378, %v488
    %490 = vmatmul.f32.gmra.mxu0 %v427
    %v491 = vpop.f32.mrf.mxu0
    %v492 = vadd.f32 %v378, %v491
    %493 = vdwg.mxu0
    %v494 = vmax.f32 %v447, 0.0
    %v495 = vmax.f32 %v450, 0.0
    %v496 = vmax.f32 %v453, 0.0
    %v497 = vmax.f32 %v456, 0.0
    %v498 = vmax.f32 %v459, 0.0
    %v499 = vmax.f32 %v462, 0.0
    %v500 = vmax.f32 %v465, 0.0
    %v501 = vmax.f32 %v468, 0.0
    %v502 = vmax.f32 %v471, 0.0
    %v503 = vmax.f32 %v474, 0.0
    %v504 = vmax.f32 %v477, 0.0
    %v505 = vmax.f32 %v480, 0.0
    %v506 = vmax.f32 %v483, 0.0
    %v507 = vmax.f32 %v486, 0.0
    %v508 = vmax.f32 %v489, 0.0
    %v509 = vmax.f32 %v492, 0.0
    %v510 = vld [vmem:[%s1] sm:$0xff]
    %v511 = vld [vmem:[%s1 + $0x8] sm:$0xff]
    %v512 = vld [vmem:[%s1 + $0x10] sm:$0xff]
    %v513 = vld [vmem:[%s1 + $0x18] sm:$0xff]
    %v514 = vld [vmem:[%s1 + $0x20] sm:$0xff]
    %v515 = vld [vmem:[%s1 + $0x28] sm:$0xff]
    %v516 = vld [vmem:[%s1 + $0x30] sm:$0xff]
    %v517 = vld [vmem:[%s1 + $0x38] sm:$0xff]
    %v518 = vld [vmem:[%s1 + $0x40] sm:$0xff]
    %v519 = vld [vmem:[%s1 + $0x48] sm:$0xff]
    %v520 = vld [vmem:[%s1 + $0x50] sm:$0xff]
    %v521 = vld [vmem:[%s1 + $0x58] sm:$0xff]
    %v522 = vld [vmem:[%s1 + $0x60] sm:$0xff]
    %v523 = vld [vmem:[%s1 + $0x68] sm:$0xff]
    %v524 = vld [vmem:[%s1 + $0x70] sm:$0xff]
    %v525 = vld [vmem:[%s1 + $0x78] sm:$0xff]
    %527 = vset.pattern.permute.xlu0 0
    %528 = vperm.xlu0 %527, %v510
    %v529 = vpop.permute.xlu0 %528
    %532 = vset.pattern.permute.xlu0 0
    %533 = vperm.xlu0 %532, %v511
    %v534 = vpop.permute.xlu0 %533
    %537 = vset.pattern.permute.xlu0 0
    %538 = vperm.xlu0 %537, %v512
    %v539 = vpop.permute.xlu0 %538
    %542 = vset.pattern.permute.xlu0 0
    %543 = vperm.xlu0 %542, %v513
    %v544 = vpop.permute.xlu0 %543
    %547 = vset.pattern.permute.xlu0 0
    %548 = vperm.xlu0 %547, %v514
    %v549 = vpop.permute.xlu0 %548
    %552 = vset.pattern.permute.xlu0 0
    %553 = vperm.xlu0 %552, %v515
    %v554 = vpop.permute.xlu0 %553
    %557 = vset.pattern.permute.xlu0 0
    %558 = vperm.xlu0 %557, %v516
    %v559 = vpop.permute.xlu0 %558
    %562 = vset.pattern.permute.xlu0 0
    %563 = vperm.xlu0 %562, %v517
    %v564 = vpop.permute.xlu0 %563
    %567 = vset.pattern.permute.xlu0 0
    %568 = vperm.xlu0 %567, %v518
    %v569 = vpop.permute.xlu0 %568
    %572 = vset.pattern.permute.xlu0 0
    %573 = vperm.xlu0 %572, %v519
    %v574 = vpop.permute.xlu0 %573
    %577 = vset.pattern.permute.xlu0 0
    %578 = vperm.xlu0 %577, %v520
    %v579 = vpop.permute.xlu0 %578
    %582 = vset.pattern.permute.xlu0 0
    %583 = vperm.xlu0 %582, %v521
    %v584 = vpop.permute.xlu0 %583
    %587 = vset.pattern.permute.xlu0 0
    %588 = vperm.xlu0 %587, %v522
    %v589 = vpop.permute.xlu0 %588
    %592 = vset.pattern.permute.xlu0 0
    %593 = vperm.xlu0 %592, %v523
    %v594 = vpop.permute.xlu0 %593
    %597 = vset.pattern.permute.xlu0 0
    %598 = vperm.xlu0 %597, %v524
    %v599 = vpop.permute.xlu0 %598
    %602 = vset.pattern.permute.xlu0 0
    %603 = vperm.xlu0 %602, %v525
    %v604 = vpop.permute.xlu0 %603
    %v606 = vmul.f32 %v494, %v529
    %v607 = vmul.f32 %v495, %v534
    %v608 = vmul.f32 %v496, %v539
    %v609 = vmul.f32 %v497, %v544
    %v610 = vmul.f32 %v498, %v549
    %v611 = vmul.f32 %v499, %v554
    %v612 = vmul.f32 %v500, %v559
    %v613 = vmul.f32 %v501, %v564
    %v614 = vmul.f32 %v502, %v569
    %v615 = vmul.f32 %v503, %v574
    %v616 = vmul.f32 %v504, %v579
    %v617 = vmul.f32 %v505, %v584
    %v618 = vmul.f32 %v506, %v589
    %v619 = vmul.f32 %v507, %v594
    %v620 = vmul.f32 %v508, %v599
    %v621 = vmul.f32 %v509, %v604
    %v622 = vmax.f32 %v606, %v607
    %v623 = vrot.slane %v622, 4
    %v624 = vmax.f32 %v622, %v623
    %v625 = vrot.slane %v624, 2
    %v626 = vmax.f32 %v624, %v625
    %v627 = vrot.slane %v626, 1
    %v628 = vmax.f32 %v626, %v627
    %v629 = vmax.f32 %v608, %v609
    %v630 = vrot.slane %v629, 4
    %v631 = vmax.f32 %v629, %v630
    %v632 = vrot.slane %v631, 2
    %v633 = vmax.f32 %v631, %v632
    %v634 = vrot.slane %v633, 1
    %v635 = vmax.f32 %v633, %v634
    %v636 = vmax.f32 %v610, %v611
    %v637 = vrot.slane %v636, 4
    %v638 = vmax.f32 %v636, %v637
    %v639 = vrot.slane %v638, 2
    %v640 = vmax.f32 %v638, %v639
    %v641 = vrot.slane %v640, 1
    %v642 = vmax.f32 %v640, %v641
    %v643 = vmax.f32 %v612, %v613
    %v644 = vrot.slane %v643, 4
    %v645 = vmax.f32 %v643, %v644
    %v646 = vrot.slane %v645, 2
    %v647 = vmax.f32 %v645, %v646
    %v648 = vrot.slane %v647, 1
    %v649 = vmax.f32 %v647, %v648
    %v650 = vmax.f32 %v614, %v615
    %v651 = vrot.slane %v650, 4
    %v652 = vmax.f32 %v650, %v651
    %v653 = vrot.slane %v652, 2
    %v654 = vmax.f32 %v652, %v653
    %v655 = vrot.slane %v654, 1
    %v656 = vmax.f32 %v654, %v655
    %v657 = vmax.f32 %v616, %v617
    %v658 = vrot.slane %v657, 4
    %v659 = vmax.f32 %v657, %v658
    %v660 = vrot.slane %v659, 2
    %v661 = vmax.f32 %v659, %v660
    %v662 = vrot.slane %v661, 1
    %v663 = vmax.f32 %v661, %v662
    %v664 = vmax.f32 %v618, %v619
    %v665 = vrot.slane %v664, 4
    %v666 = vmax.f32 %v664, %v665
    %v667 = vrot.slane %v666, 2
    %v668 = vmax.f32 %v666, %v667
    %v669 = vrot.slane %v668, 1
    %v670 = vmax.f32 %v668, %v669
    %v671 = vmax.f32 %v620, %v621
    %v672 = vrot.slane %v671, 4
    %v673 = vmax.f32 %v671, %v672
    %v674 = vrot.slane %v673, 2
    %v675 = vmax.f32 %v673, %v674
    %v676 = vrot.slane %v675, 1
    %v677 = vmax.f32 %v675, %v676
    %vm686 = vcmask 1041409
    %v687 = vsel %vm686, %v635, %v628
    %vm688 = vcmask 1042434
    %v689 = vsel %vm688, %v642, %v687
    %vm690 = vcmask 1043459
    %v691 = vsel %vm690, %v649, %v689
    %vm692 = vcmask 1044484
    %v693 = vsel %vm692, %v656, %v691
    %vm694 = vcmask 1045509
    %v695 = vsel %vm694, %v663, %v693
    %vm696 = vcmask 1046534
    %v697 = vsel %vm696, %v670, %v695
    %vm698 = vcmask 1047559
    %v699 = vsel %vm698, %v677, %v697
    %701 = vst [vmem:[#allocation2] sm:$0xff] %v699
    // Predicated region
    $region26: #{tpu_custom_call.1} parent=1 // pred_check
      _
    $region27: #{tpu_custom_call.1} parent=1 // pred_check_branch
      %703 = sbr.rel (0) target = $region29
    $region28: #{tpu_custom_call.1} parent=1 // pred_region
      %705 = vsyncadd [#allocation3], 0
      %s707 = sshll.u32 [#allocation2], 4
      %s708 = int_to_ptr.vmem [resolvable:$true] %s707
      %s709 = sshll.u32 %s6, 4
      %s710 = int_to_ptr.hbm [resolvable:$true] %s709
      %712 = dma.vmem_to_hbm [thread:$0]  %s708, 128, %s710, [#allocation3]
    $region29: #{tpu_custom_call.1} parent=1 // pred_fallthru
      _
    // Predicated region
    $region30: #{tpu_custom_call.1} parent=1 // pred_check
      _
    $region31: #{tpu_custom_call.1} parent=1 // pred_check_branch
      %714 = sbr.rel (0) target = $region33
    $region32: #{tpu_custom_call.1} parent=1 // pred_region
      %716 = dma.done [#allocation3], 128
    $region33: #{tpu_custom_call.1} parent=1 // pred_fallthru
      _
    %717 = vsyncpa [#allocation3], 1

</llo_original>
